<compile_context>
chip_gen: v7x
topology: tpu7x:2x2x1
jax: 0.10.0
libtpu: 0.0.40
codegen_flags: <defaults>
</compile_context>

<pallas_src>
import functools

import jax
import jax.numpy as jnp
from jax.experimental import pallas as pl
from jax.experimental.pallas import tpu as pltpu

BN_EPS = 1e-5
LANE = 128


def _round_up(a, b):
    return (a + b - 1) // b * b


# ------------------------------- kernel body ---------------------------------
def _make_res_tdnn_kernel(k, pad, t_tile, has_halo):
    """One (batch, time-tile): Conv1d('same') -> ReLU -> BN(eval) -> +residual."""

    def kernel(cur_ref, *rest):
        if has_halo:
            halo_ref, w_ref, bias_ref, scale_ref, shift_ref, o_ref = rest
            # rows [i*Tt, i*Tt+Tt) of the padded input plus the first 2*pad rows
            # of the next tile == the full conv window for this output tile.
            window = jnp.concatenate(
                [cur_ref[...], halo_ref[: 2 * pad, :]], axis=0)
        else:  # k == 1, pad == 0: no halo needed
            w_ref, bias_ref, scale_ref, shift_ref, o_ref = rest
            window = cur_ref[...]

        # k shifted matmuls, M = t_tile, bf16 operands, f32 accumulation (MXU).
        acc = jnp.dot(window[0:t_tile, :], w_ref[0],
                      preferred_element_type=jnp.float32)
        for dk in range(1, k):
            acc = acc + jnp.dot(window[dk:dk + t_tile, :], w_ref[dk],
                                preferred_element_type=jnp.float32)

        y = acc + bias_ref[...]                      # conv bias        (f32)
        y = jnp.maximum(y, 0.0)                      # ReLU; Dropout(p=0)=id
        y = y * scale_ref[...] + shift_ref[...]      # BatchNorm1d (inference)
        # residual = rows [pad, pad+t_tile) of the window == this x tile
        y = y + window[pad:pad + t_tile, :].astype(jnp.float32)
        o_ref[...] = y.astype(o_ref.dtype)

    return kernel


# --------------------------------- wrapper ------------------------------------
def res_block_tdnn(x, w, b, bn_gamma, bn_beta, bn_mean, bn_var, *,
                   context_size=5, padding=2, t_tile=256,
                   compute_dtype=jnp.bfloat16, bn_eps=BN_EPS):
    """ResBlockTDNN forward.  x: [B, T, C] -> [B, T, C];  w: [k, C, C]."""
    B, T, C = x.shape
    k, pad = context_size, padding
    if w.shape != (k, C, C):
        raise ValueError(f"weight shape {w.shape} != {(k, C, C)}")
    if 2 * pad != k - 1:
        raise ValueError("ResBlockTDNN needs T_out == T (2*padding == context_size-1)")

    # ---- lane / sublane friendly padded sizes --------------------------------
    Cp = _round_up(C, LANE)                       # lane-dense channels
    H = max(8, _round_up(2 * pad, 8))             # halo block rows (sublane mult)
    Tt = min(_round_up(t_tile, H), _round_up(T, H))
    Tp = _round_up(T, Tt)
    nT = Tp // Tt
    rows = Tp + (H if pad > 0 else 0)             # halo rows live just past Tp

    cd = compute_dtype
    # Single padded bf16 copy of x: conv 'same' zero padding + time round-up +
    # lane round-up in one jnp.pad (done once; this is the only extra copy).
    x_p = jnp.pad(x.astype(cd), ((0, 0), (pad, rows - T - pad), (0, Cp - C)))
    w_p = jnp.pad(w.astype(cd), ((0, 0), (0, Cp - C), (0, Cp - C)))

    # Fold BatchNorm (running stats) into a per-channel affine, f32.
    inv_std = (bn_gamma.astype(jnp.float32)
               / jnp.sqrt(bn_var.astype(jnp.float32) + bn_eps))
    scale = jnp.pad(inv_std, (0, Cp - C)).reshape(1, Cp)
    shift = jnp.pad(bn_beta.astype(jnp.float32)
                    - bn_mean.astype(jnp.float32) * inv_std,
                    (0, Cp - C)).reshape(1, Cp)
    bias = jnp.pad(b.astype(jnp.float32), (0, Cp - C)).reshape(1, Cp)

    grid = (B, nT)
    in_specs = [pl.BlockSpec((None, Tt, Cp), lambda bb, i: (bb, i, 0))]
    inputs = [x_p]
    if pad > 0:
        halo_blocks = Tt // H
        in_specs.append(
            pl.BlockSpec((None, H, Cp),
                         lambda bb, i: (bb, (i + 1) * halo_blocks, 0)))
        inputs.append(x_p)                        # same array, tiny halo view
    in_specs += [
        pl.BlockSpec((k, Cp, Cp), lambda bb, i: (0, 0, 0)),   # weights resident
        pl.BlockSpec((1, Cp), lambda bb, i: (0, 0)),          # bias
        pl.BlockSpec((1, Cp), lambda bb, i: (0, 0)),          # bn scale
        pl.BlockSpec((1, Cp), lambda bb, i: (0, 0)),          # bn shift
    ]
    inputs += [w_p, bias, scale, shift]

    out = pl.pallas_call(
        _make_res_tdnn_kernel(k, pad, Tt, pad > 0),
        out_shape=jax.ShapeDtypeStruct((B, Tp, Cp), x.dtype),
        grid=grid,
        in_specs=in_specs,
        out_specs=pl.BlockSpec((None, Tt, Cp), lambda bb, i: (bb, i, 0)),
        compiler_params=pltpu.CompilerParams(
            dimension_semantics=("parallel", "parallel"),
            vmem_limit_bytes=48 * 1024 * 1024),
    )(*inputs)
    return out[:, :T, :C]


# ------------------------------ pure-JAX reference ----------------------------
def _reference(x, w, b, gamma, beta, mean, var, pad, eps=BN_EPS):
    """f32 reference of TDNN(x) + x (channels-last, inference-mode BN)."""
    B, T, C = x.shape
    k = w.shape[0]
    xp = jnp.pad(x, ((0, 0), (pad, pad), (0, 0)))
    y = jnp.zeros((B, T, C), jnp.float32)
    for dk in range(k):
        y = y + jnp.einsum("btc,cd->btd", xp[:, dk:dk + T, :], w[dk],
                           precision=jax.lax.Precision.HIGHEST)
    y = y + b
    y = jnp.maximum(y, 0.0)
    inv = gamma / jnp.sqrt(var + eps)
    return y * inv + (beta - mean * inv) + x


# ----------------------------------- main --------------------------------------
if __name__ == "__main__":
    # Small shapes consistent with ResBlockTDNN(C, C, 5, padding=2):
    B, T, C, K, PAD = 2, 64, 128, 5, 2
    key = jax.random.PRNGKey(0)
    kx, kw, kb, kg, kbe, km, kv = jax.random.split(key, 7)
    x = jax.random.normal(kx, (B, T, C), jnp.float32)
    w = jax.random.normal(kw, (K, C, C), jnp.float32) / jnp.sqrt(float(K * C))
    b = 0.01 * jax.random.normal(kb, (C,), jnp.float32)
    gamma = 1.0 + 0.1 * jax.random.normal(kg, (C,), jnp.float32)
    beta = 0.1 * jax.random.normal(kbe, (C,), jnp.float32)
    rmean = 0.1 * jax.random.normal(km, (C,), jnp.float32)
    rvar = 1.0 + 0.1 * jnp.abs(jax.random.normal(kv, (C,), jnp.float32))

    # small t_tile so the grid has >1 time tile and the halo path is exercised
    fwd = jax.jit(functools.partial(res_block_tdnn, context_size=K,
                                    padding=PAD, t_tile=32))
    out = jax.block_until_ready(fwd(x, w, b, gamma, beta, rmean, rvar))

    assert out.shape == (B, T, C), out.shape
    assert bool(jnp.all(jnp.isfinite(out)))

    # Compare against an f32 reference evaluated on the same bf16-rounded
    # operands (the kernel uses bf16 matmul operands with f32 accumulation).
    x_bf = x.astype(jnp.bfloat16).astype(jnp.float32)
    w_bf = w.astype(jnp.bfloat16).astype(jnp.float32)
    ref = _reference(x_bf, w_bf, b, gamma, beta, rmean, rvar, PAD)
    max_err = float(jnp.max(jnp.abs(out - ref)))
    assert max_err < 2e-2, f"max abs err {max_err}"

    print("KERNEL_OK")
</pallas_src>

<mosaic_0001>
module attributes {stable_mosaic.version = 11 : i64} {
  func.func @kernel(%arg0: i32, %arg1: i32, %arg2: memref<1x32x128xbf16, #tpu.memory_space<vmem>>, %arg3: memref<1x8x128xbf16, #tpu.memory_space<vmem>>, %arg4: memref<5x128x128xbf16, #tpu.memory_space<vmem>>, %arg5: memref<1x128xf32, #tpu.memory_space<vmem>>, %arg6: memref<1x128xf32, #tpu.memory_space<vmem>>, %arg7: memref<1x128xf32, #tpu.memory_space<vmem>>, %arg8: memref<1x32x128xf32, #tpu.memory_space<vmem>>) attributes {dimension_semantics = [#tpu.dimension_semantics<parallel>, #tpu.dimension_semantics<parallel>], iteration_bounds = array<i64: 2, 2>, scalar_prefetch = 0 : i64, scratch_operands = 0 : i64, tpu.core_type = #tpu.core_type<tc>, window_params = [{transform_indices = @transform_0, window_bounds = array<i64: 1, 32, 128>}, {transform_indices = @transform_1, window_bounds = array<i64: 1, 8, 128>}, {pipeline_mode = #tpu.pipeline_mode<synchronous>, transform_indices = @transform_2, window_bounds = array<i64: 5, 128, 128>}, {pipeline_mode = #tpu.pipeline_mode<synchronous>, transform_indices = @transform_3, window_bounds = array<i64: 1, 128>}, {pipeline_mode = #tpu.pipeline_mode<synchronous>, transform_indices = @transform_4, window_bounds = array<i64: 1, 128>}, {pipeline_mode = #tpu.pipeline_mode<synchronous>, transform_indices = @transform_5, window_bounds = array<i64: 1, 128>}, {transform_indices = @transform_6, window_bounds = array<i64: 1, 32, 128>}]} {
    %c0 = arith.constant 0 : index
    %c0_0 = arith.constant 0 : index
    %c0_1 = arith.constant 0 : index
    %0 = vector.load %arg2[%c0, %c0_0, %c0_1] : memref<1x32x128xbf16, #tpu.memory_space<vmem>>, vector<1x32x128xbf16>
    %1 = vector.shape_cast %0 : vector<1x32x128xbf16> to vector<32x128xbf16>
    %c0_2 = arith.constant 0 : index
    %c0_3 = arith.constant 0 : index
    %c0_4 = arith.constant 0 : index
    %2 = vector.load %arg3[%c0_2, %c0_3, %c0_4] : memref<1x8x128xbf16, #tpu.memory_space<vmem>>, vector<1x4x128xbf16>
    %3 = vector.shape_cast %2 : vector<1x4x128xbf16> to vector<4x128xbf16>
    %4 = tpu.concatenate %1, %3 in 0 : vector<32x128xbf16>, vector<4x128xbf16> -> vector<36x128xbf16>
    %5 = vector.extract_strided_slice %4 {offsets = [0, 0], sizes = [32, 128], strides = [1, 1]} : vector<36x128xbf16> to vector<32x128xbf16>
    %c0_5 = arith.constant 0 : index
    %c0_6 = arith.constant 0 : index
    %c0_7 = arith.constant 0 : index
    %6 = vector.load %arg4[%c0_5, %c0_6, %c0_7] : memref<5x128x128xbf16, #tpu.memory_space<vmem>>, vector<1x128x128xbf16>
    %7 = vector.shape_cast %6 : vector<1x128x128xbf16> to vector<128x128xbf16>
    %cst = arith.constant dense<0.000000e+00> : vector<32x128xf32>
    %8 = tpu.matmul %5, %7, %cst {dimension_numbers = #tpu.dot_dimension_numbers<[1], [0], [0], [1], [0, 0, 1, 1], [], []>} : vector<32x128xbf16>, vector<128x128xbf16>, vector<32x128xf32> -> vector<32x128xf32>
    %9 = vector.extract_strided_slice %4 {offsets = [1, 0], sizes = [32, 128], strides = [1, 1]} : vector<36x128xbf16> to vector<32x128xbf16>
    %c1 = arith.constant 1 : index
    %c0_8 = arith.constant 0 : index
    %c0_9 = arith.constant 0 : index
    %10 = vector.load %arg4[%c1, %c0_8, %c0_9] : memref<5x128x128xbf16, #tpu.memory_space<vmem>>, vector<1x128x128xbf16>
    %11 = vector.shape_cast %10 : vector<1x128x128xbf16> to vector<128x128xbf16>
    %cst_10 = arith.constant dense<0.000000e+00> : vector<32x128xf32>
    %12 = tpu.matmul %9, %11, %cst_10 {dimension_numbers = #tpu.dot_dimension_numbers<[1], [0], [0], [1], [0, 0, 1, 1], [], []>} : vector<32x128xbf16>, vector<128x128xbf16>, vector<32x128xf32> -> vector<32x128xf32>
    %13 = arith.addf %8, %12 : vector<32x128xf32>
    %14 = vector.extract_strided_slice %4 {offsets = [2, 0], sizes = [32, 128], strides = [1, 1]} : vector<36x128xbf16> to vector<32x128xbf16>
    %c2 = arith.constant 2 : index
    %c0_11 = arith.constant 0 : index
    %c0_12 = arith.constant 0 : index
    %15 = vector.load %arg4[%c2, %c0_11, %c0_12] : memref<5x128x128xbf16, #tpu.memory_space<vmem>>, vector<1x128x128xbf16>
    %16 = vector.shape_cast %15 : vector<1x128x128xbf16> to vector<128x128xbf16>
    %cst_13 = arith.constant dense<0.000000e+00> : vector<32x128xf32>
    %17 = tpu.matmul %14, %16, %cst_13 {dimension_numbers = #tpu.dot_dimension_numbers<[1], [0], [0], [1], [0, 0, 1, 1], [], []>} : vector<32x128xbf16>, vector<128x128xbf16>, vector<32x128xf32> -> vector<32x128xf32>
    %18 = arith.addf %13, %17 : vector<32x128xf32>
    %19 = vector.extract_strided_slice %4 {offsets = [3, 0], sizes = [32, 128], strides = [1, 1]} : vector<36x128xbf16> to vector<32x128xbf16>
    %c3 = arith.constant 3 : index
    %c0_14 = arith.constant 0 : index
    %c0_15 = arith.constant 0 : index
    %20 = vector.load %arg4[%c3, %c0_14, %c0_15] : memref<5x128x128xbf16, #tpu.memory_space<vmem>>, vector<1x128x128xbf16>
    %21 = vector.shape_cast %20 : vector<1x128x128xbf16> to vector<128x128xbf16>
    %cst_16 = arith.constant dense<0.000000e+00> : vector<32x128xf32>
    %22 = tpu.matmul %19, %21, %cst_16 {dimension_numbers = #tpu.dot_dimension_numbers<[1], [0], [0], [1], [0, 0, 1, 1], [], []>} : vector<32x128xbf16>, vector<128x128xbf16>, vector<32x128xf32> -> vector<32x128xf32>
    %23 = arith.addf %18, %22 : vector<32x128xf32>
    %24 = vector.extract_strided_slice %4 {offsets = [4, 0], sizes = [32, 128], strides = [1, 1]} : vector<36x128xbf16> to vector<32x128xbf16>
    %c4 = arith.constant 4 : index
    %c0_17 = arith.constant 0 : index
    %c0_18 = arith.constant 0 : index
    %25 = vector.load %arg4[%c4, %c0_17, %c0_18] : memref<5x128x128xbf16, #tpu.memory_space<vmem>>, vector<1x128x128xbf16>
    %26 = vector.shape_cast %25 : vector<1x128x128xbf16> to vector<128x128xbf16>
    %cst_19 = arith.constant dense<0.000000e+00> : vector<32x128xf32>
    %27 = tpu.matmul %24, %26, %cst_19 {dimension_numbers = #tpu.dot_dimension_numbers<[1], [0], [0], [1], [0, 0, 1, 1], [], []>} : vector<32x128xbf16>, vector<128x128xbf16>, vector<32x128xf32> -> vector<32x128xf32>
    %28 = arith.addf %23, %27 : vector<32x128xf32>
    %c0_20 = arith.constant 0 : index
    %c0_21 = arith.constant 0 : index
    %29 = vector.load %arg5[%c0_20, %c0_21] : memref<1x128xf32, #tpu.memory_space<vmem>>, vector<1x128xf32>
    %30 = vector.broadcast %29 : vector<1x128xf32> to vector<32x128xf32>
    %31 = arith.addf %28, %30 : vector<32x128xf32>
    %cst_22 = arith.constant 0.000000e+00 : f32
    %32 = vector.broadcast %cst_22 : f32 to vector<32x128xf32>
    %33 = arith.maximumf %31, %32 : vector<32x128xf32>
    %c0_23 = arith.constant 0 : index
    %c0_24 = arith.constant 0 : index
    %34 = vector.load %arg6[%c0_23, %c0_24] : memref<1x128xf32, #tpu.memory_space<vmem>>, vector<1x128xf32>
    %35 = vector.broadcast %34 : vector<1x128xf32> to vector<32x128xf32>
    %36 = arith.mulf %33, %35 : vector<32x128xf32>
    %c0_25 = arith.constant 0 : index
    %c0_26 = arith.constant 0 : index
    %37 = vector.load %arg7[%c0_25, %c0_26] : memref<1x128xf32, #tpu.memory_space<vmem>>, vector<1x128xf32>
    %38 = vector.broadcast %37 : vector<1x128xf32> to vector<32x128xf32>
    %39 = arith.addf %36, %38 : vector<32x128xf32>
    %40 = vector.extract_strided_slice %4 {offsets = [2, 0], sizes = [32, 128], strides = [1, 1]} : vector<36x128xbf16> to vector<32x128xbf16>
    %41 = arith.extf %40 : vector<32x128xbf16> to vector<32x128xf32>
    %42 = arith.addf %39, %41 : vector<32x128xf32>
    %c0_27 = arith.constant 0 : index
    %c0_28 = arith.constant 0 : index
    %c0_29 = arith.constant 0 : index
    %43 = vector.load %arg8[%c0_27, %c0_28, %c0_29] : memref<1x32x128xf32, #tpu.memory_space<vmem>>, vector<1x32x128xf32>
    %44 = vector.shape_cast %43 : vector<1x32x128xf32> to vector<32x128xf32>
    %45 = vector.shape_cast %42 : vector<32x128xf32> to vector<1x32x128xf32>
    tpu.vector_store %arg8[%c0_27, %c0_28, %c0_29], %45 {strides = array<i32>} : memref<1x32x128xf32, #tpu.memory_space<vmem>>, vector<1x32x128xf32>,
    return
  }
  func.func @transform_0(%arg0: i32, %arg1: i32) -> (i32, i32, i32) {
    %c0_i32 = arith.constant 0 : i32
    %c0_i32_0 = arith.constant 0 : i32
    return %arg0, %arg1, %c0_i32 : i32, i32, i32
  }
  func.func @transform_1(%arg0: i32, %arg1: i32) -> (i32, i32, i32) {
    %c1_i32 = arith.constant 1 : i32
    %0 = arith.addi %arg1, %c1_i32 : i32
    %c4_i32 = arith.constant 4 : i32
    %1 = arith.muli %0, %c4_i32 : i32
    %c0_i32 = arith.constant 0 : i32
    %c0_i32_0 = arith.constant 0 : i32
    return %arg0, %1, %c0_i32 : i32, i32, i32
  }
  func.func @transform_2(%arg0: i32, %arg1: i32) -> (i32, i32, i32) {
    %c0_i32 = arith.constant 0 : i32
    %c0_i32_0 = arith.constant 0 : i32
    %c0_i32_1 = arith.constant 0 : i32
    %c0_i32_2 = arith.constant 0 : i32
    return %c0_i32, %c0_i32_0, %c0_i32_1 : i32, i32, i32
  }
  func.func @transform_3(%arg0: i32, %arg1: i32) -> (i32, i32) {
    %c0_i32 = arith.constant 0 : i32
    %c0_i32_0 = arith.constant 0 : i32
    %c0_i32_1 = arith.constant 0 : i32
    return %c0_i32, %c0_i32_0 : i32, i32
  }
  func.func @transform_4(%arg0: i32, %arg1: i32) -> (i32, i32) {
    %c0_i32 = arith.constant 0 : i32
    %c0_i32_0 = arith.constant 0 : i32
    %c0_i32_1 = arith.constant 0 : i32
    return %c0_i32, %c0_i32_0 : i32, i32
  }
  func.func @transform_5(%arg0: i32, %arg1: i32) -> (i32, i32) {
    %c0_i32 = arith.constant 0 : i32
    %c0_i32_0 = arith.constant 0 : i32
    %c0_i32_1 = arith.constant 0 : i32
    return %c0_i32, %c0_i32_0 : i32, i32
  }
  func.func @transform_6(%arg0: i32, %arg1: i32) -> (i32, i32, i32) {
    %c0_i32 = arith.constant 0 : i32
    %c0_i32_0 = arith.constant 0 : i32
    return %arg0, %arg1, %c0_i32 : i32, i32, i32
  }
}

</mosaic_0001>

<llo_original>
// kernel: res_block_tdnn.1
$region0: #{res_block_tdnn.1}
  #allocation0 [shape = 'u32[]', space=smem, size = 0x4, offset = 0x4, fixed_abs, tag = 'smem constant byte address 0x4 - core index']
  #allocation1 [shape = 'u32[144,128]{1,0:T(1,128)}', space=vmem, size = 0x12000, scoped, tag = 'internal scratch']
  %s0 = inlined_call_operand.vmem [shape: bf16[2,72,128], index: 0, kind: input, shape index: {}, may-alias: {0,1}]
  %s1 = inlined_call_operand.vmem [shape: bf16[2,72,128], index: 1, kind: input, shape index: {}, may-alias: {0,1}]
  %s2 = inlined_call_operand.vmem [shape: bf16[5,128,128], index: 2, kind: input, shape index: {}]
  %s3 = inlined_call_operand.vmem [shape: f32[1,128], index: 3, kind: input, shape index: {}]
  %s4 = inlined_call_operand.vmem [shape: f32[1,128], index: 4, kind: input, shape index: {}]
  %s5 = inlined_call_operand.vmem [shape: f32[1,128], index: 5, kind: input, shape index: {}]
  %s6 = inlined_call_operand.hbm [shape: f32[2,64,128], index: 6, kind: output, shape index: {}]
  %s7 = sld [smem:[#allocation0]]
  $region57: #{res_block_tdnn.1} parent=0
    _
  %s9 = ssub.s32 1, %s7
  %s10 = scalar_select 0, %s9, %s7
  $region1: #{res_block_tdnn.1} parent=0
    #allocation2 [shape = 'u8[32768]{0}', space=vmem, size = 0x8000, scoped, tag = 'output window, operand 0']
    #allocation3 [shape = 's32[2]{0}', space=sflag, size = 0x8, scoped, tag = 'scoped memory for res_block_tdnn.1']
    %11 = vsyncpa [#allocation3], 0
    %s12 = scalar_lea.sflag [#allocation3], 1
    %13 = vsyncpa %s12, 0
    loop: start=0, step=1, limit=6
    $region2: #{res_block_tdnn.1} parent=1 // loop_pre_header
      _
    $region3: #{res_block_tdnn.1} parent=1 // loop_header
      %s15 = sphi 0, %s19
      %p16 = scmp.ge.s32.totalorder %s15, 6
      %s22 = sphi 0, %s34
      %s23 = sphi 0, %s30
      %s24 = sphi 0, %s22
      %s25 = sphi 0, %s23
      %s26 = sphi 0, %s24
      %s27 = sphi 0, %s25
      %s39 = sphi 0, %s41
      %s42 = sphi 0, %s39
      %s43 = sphi 0, %s42
      %s59 = sphi 0, %s43
      %s71 = sphi 0, %s73
      %s74 = sphi 0, %s71
      %s75 = sphi 0, %s74
      %s91 = sphi 0, %s75
      %s95 = sphi 0, %s95
      %s97 = sphi 0, %s95
      %s98 = sphi 0, %s97
      %s112 = sphi 0, %s98
      %s116 = sphi 0, %s116
      %s118 = sphi 0, %s116
      %s119 = sphi 0, %s118
      %s133 = sphi 0, %s119
      %s137 = sphi 0, %s137
      %s139 = sphi 0, %s137
      %s140 = sphi 0, %s139
      %s154 = sphi 0, %s140
      %s158 = sphi 0, %s158
      %s160 = sphi 0, %s158
      %s161 = sphi 0, %s160
      %s175 = sphi 0, %s161
      %s183 = sphi 0, %s185
      %s186 = sphi 0, %s183
      %s187 = sphi 0, %s186
      %s203 = sphi 0, %s187
    $region4: #{res_block_tdnn.1} parent=1 // loop_header_branch
      %18 = sbr.rel (%p16) target = $region8
    $region5: #{res_block_tdnn.1} parent=1 // loop_body
      %s20 = ssub.s32 %s15, 1
      %s21 = ssub.s32 %s15, 2
      %s28 = sadd.s32 1, %s23
      %p29 = scmp.ge.s32.totalorder %s28, 2
      %s30 = scalar_select %p29, 0, %s28
      %s31 = sadd.s32 1, %s22
      %s32 = scalar_select %p29, %s31, %s22
      %p33 = scmp.ge.s32.totalorder %s32, 2
      %s34 = scalar_select %p33, 0, %s32
      %s35 = ssub.s32 %s22, %s34
      %s36 = ssub.s32 %s23, %s30
      %s37 = sor.u32 %s35, %s36
      %p38 = scmp.eq.s32.totalorder %s37, 0
      %s40 = sadd.s32 %s39, 1
      %s41 = scalar_select %p38, %s39, %s40
      %p44 = pneg %p38
      %p45 = scmp.eq.s32.totalorder %s15, 3
      %p46 = por %p44, %p45
      %p47 = scmp.ne.s32.totalorder %s39, %s42
      %p48 = scmp.eq.s32.totalorder %s15, 0
      %p49 = por %p47, %p48
      %p50 = scmp.ne.s32.totalorder %s39, %s42
      %p51 = scmp.eq.s32.totalorder %s20, 3
      %p52 = por %p50, %p51
      %p53 = scmp.ne.s32.totalorder %s42, %s43
      %p54 = scmp.eq.s32.totalorder %s20, 0
      %p55 = por %p53, %p54
      %p56 = scmp.ne.s32.totalorder %s42, %s43
      %p57 = scmp.eq.s32.totalorder %s21, 3
      %p58 = por %p56, %p57
      %p60 = scmp.ne.s32.totalorder %s43, %s59
      %p61 = scmp.eq.s32.totalorder %s21, 0
      %p62 = por %p60, %p61
      %s63 = sadd.s32 %s23, 1
      %s64 = smul.u32 %s63, 4
      %s65 = sadd.s32 %s30, 1
      %s66 = smul.u32 %s65, 4
      %s67 = ssub.s32 %s22, %s34
      %s68 = ssub.s32 %s64, %s66
      %s69 = sor.u32 %s67, %s68
      %p70 = scmp.eq.s32.totalorder %s69, 0
      %s72 = sadd.s32 %s71, 1
      %s73 = scalar_select %p70, %s71, %s72
      %p76 = pneg %p70
      %p77 = scmp.eq.s32.totalorder %s15, 3
      %p78 = por %p76, %p77
      %p79 = scmp.ne.s32.totalorder %s71, %s74
      %p80 = scmp.eq.s32.totalorder %s15, 0
      %p81 = por %p79, %p80
      %p82 = scmp.ne.s32.totalorder %s71, %s74
      %p83 = scmp.eq.s32.totalorder %s20, 3
      %p84 = por %p82, %p83
      %p85 = scmp.ne.s32.totalorder %s74, %s75
      %p86 = scmp.eq.s32.totalorder %s20, 0
      %p87 = por %p85, %p86
      %p88 = scmp.ne.s32.totalorder %s74, %s75
      %p89 = scmp.eq.s32.totalorder %s21, 3
      %p90 = por %p88, %p89
      %p92 = scmp.ne.s32.totalorder %s75, %s91
      %p93 = scmp.eq.s32.totalorder %s21, 0
      %p94 = por %p92, %p93
      %s96 = sadd.s32 %s95, 1
      %p99 = scmp.eq.s32.totalorder %s15, 3
      %p100 = scmp.ne.s32.totalorder %s95, %s97
      %p101 = scmp.eq.s32.totalorder %s15, 0
      %p102 = por %p100, %p101
      %p103 = scmp.ne.s32.totalorder %s95, %s97
      %p104 = scmp.eq.s32.totalorder %s20, 3
      %p105 = por %p103, %p104
      %p106 = scmp.ne.s32.totalorder %s97, %s98
      %p107 = scmp.eq.s32.totalorder %s20, 0
      %p108 = por %p106, %p107
      %p109 = scmp.ne.s32.totalorder %s97, %s98
      %p110 = scmp.eq.s32.totalorder %s21, 3
      %p111 = por %p109, %p110
      %p113 = scmp.ne.s32.totalorder %s98, %s112
      %p114 = scmp.eq.s32.totalorder %s21, 0
      %p115 = por %p113, %p114
      %s117 = sadd.s32 %s116, 1
      %p120 = scmp.eq.s32.totalorder %s15, 3
      %p121 = scmp.ne.s32.totalorder %s116, %s118
      %p122 = scmp.eq.s32.totalorder %s15, 0
      %p123 = por %p121, %p122
      %p124 = scmp.ne.s32.totalorder %s116, %s118
      %p125 = scmp.eq.s32.totalorder %s20, 3
      %p126 = por %p124, %p125
      %p127 = scmp.ne.s32.totalorder %s118, %s119
      %p128 = scmp.eq.s32.totalorder %s20, 0
      %p129 = por %p127, %p128
      %p130 = scmp.ne.s32.totalorder %s118, %s119
      %p131 = scmp.eq.s32.totalorder %s21, 3
      %p132 = por %p130, %p131
      %p134 = scmp.ne.s32.totalorder %s119, %s133
      %p135 = scmp.eq.s32.totalorder %s21, 0
      %p136 = por %p134, %p135
      %s138 = sadd.s32 %s137, 1
      %p141 = scmp.eq.s32.totalorder %s15, 3
      %p142 = scmp.ne.s32.totalorder %s137, %s139
      %p143 = scmp.eq.s32.totalorder %s15, 0
      %p144 = por %p142, %p143
      %p145 = scmp.ne.s32.totalorder %s137, %s139
      %p146 = scmp.eq.s32.totalorder %s20, 3
      %p147 = por %p145, %p146
      %p148 = scmp.ne.s32.totalorder %s139, %s140
      %p149 = scmp.eq.s32.totalorder %s20, 0
      %p150 = por %p148, %p149
      %p151 = scmp.ne.s32.totalorder %s139, %s140
      %p152 = scmp.eq.s32.totalorder %s21, 3
      %p153 = por %p151, %p152
      %p155 = scmp.ne.s32.totalorder %s140, %s154
      %p156 = scmp.eq.s32.totalorder %s21, 0
      %p157 = por %p155, %p156
      %s159 = sadd.s32 %s158, 1
      %p162 = scmp.eq.s32.totalorder %s15, 3
      %p163 = scmp.ne.s32.totalorder %s158, %s160
      %p164 = scmp.eq.s32.totalorder %s15, 0
      %p165 = por %p163, %p164
      %p166 = scmp.ne.s32.totalorder %s158, %s160
      %p167 = scmp.eq.s32.totalorder %s20, 3
      %p168 = por %p166, %p167
      %p169 = scmp.ne.s32.totalorder %s160, %s161
      %p170 = scmp.eq.s32.totalorder %s20, 0
      %p171 = por %p169, %p170
      %p172 = scmp.ne.s32.totalorder %s160, %s161
      %p173 = scmp.eq.s32.totalorder %s21, 3
      %p174 = por %p172, %p173
      %p176 = scmp.ne.s32.totalorder %s161, %s175
      %p177 = scmp.eq.s32.totalorder %s21, 0
      %p178 = por %p176, %p177
      %s179 = ssub.s32 %s22, %s34
      %s180 = ssub.s32 %s23, %s30
      %s181 = sor.u32 %s179, %s180
      %p182 = scmp.eq.s32.totalorder %s181, 0
      %s184 = sadd.s32 %s183, 1
      %s185 = scalar_select %p182, %s183, %s184
      %p188 = pneg %p182
      %p189 = scmp.eq.s32.totalorder %s15, 3
      %p190 = por %p188, %p189
      %p191 = scmp.ne.s32.totalorder %s183, %s186
      %p192 = scmp.eq.s32.totalorder %s15, 0
      %p193 = por %p191, %p192
      %p194 = scmp.ne.s32.totalorder %s183, %s186
      %p195 = scmp.eq.s32.totalorder %s20, 3
      %p196 = por %p194, %p195
      %p197 = scmp.ne.s32.totalorder %s186, %s187
      %p198 = scmp.eq.s32.totalorder %s20, 0
      %p199 = por %p197, %p198
      %p200 = scmp.ne.s32.totalorder %s186, %s187
      %p201 = scmp.eq.s32.totalorder %s21, 3
      %p202 = por %p200, %p201
      %p204 = scmp.ne.s32.totalorder %s187, %s203
      %p205 = scmp.eq.s32.totalorder %s21, 0
      %p206 = por %p204, %p205
      %p207 = scmp.le.s32.totalorder 1, %s15
      %p208 = scmp.lt.s32.totalorder %s15, 5
      %p209 = pnand %p207, %p208
      %p210 = pneg %p209
      // Predicated region
      $region9: #{res_block_tdnn.1} parent=5 // pred_check
        _
      $region10: #{res_block_tdnn.1} parent=5 // pred_check_branch
        %212 = sbr.rel (%p209) target = $region12
      $region11: #{res_block_tdnn.1} parent=5 // pred_region
        %s213 = ssub.s32 %s15, 1
        // Predicated region
        $region13: #{res_block_tdnn.1} parent=11 // pred_check
          %p214 = pneg %p108
        $region14: #{res_block_tdnn.1} parent=11 // pred_check_branch
          %216 = sbr.rel (%p214) target = $region16
        $region15: #{res_block_tdnn.1} parent=11 // pred_region
          _
        $region16: #{res_block_tdnn.1} parent=11 // pred_fallthru
          _
        // Predicated region
        $region17: #{res_block_tdnn.1} parent=11 // pred_check
          %p217 = pneg %p129
        $region18: #{res_block_tdnn.1} parent=11 // pred_check_branch
          %219 = sbr.rel (%p217) target = $region20
        $region19: #{res_block_tdnn.1} parent=11 // pred_region
          _
        $region20: #{res_block_tdnn.1} parent=11 // pred_fallthru
          _
        // Predicated region
        $region21: #{res_block_tdnn.1} parent=11 // pred_check
          %p220 = pneg %p150
        $region22: #{res_block_tdnn.1} parent=11 // pred_check_branch
          %222 = sbr.rel (%p220) target = $region24
        $region23: #{res_block_tdnn.1} parent=11 // pred_region
          _
        $region24: #{res_block_tdnn.1} parent=11 // pred_fallthru
          _
        // Predicated region
        $region25: #{res_block_tdnn.1} parent=11 // pred_check
          %p223 = pneg %p171
        $region26: #{res_block_tdnn.1} parent=11 // pred_check_branch
          %225 = sbr.rel (%p223) target = $region28
        $region27: #{res_block_tdnn.1} parent=11 // pred_region
          _
        $region28: #{res_block_tdnn.1} parent=11 // pred_fallthru
          _
      $region12: #{res_block_tdnn.1} parent=5 // pred_fallthru
        _
      %p226 = scmp.lt.s32.totalorder %s15, 4
      // Predicated region
      $region29: #{res_block_tdnn.1} parent=5 // pred_check
        %p227 = pneg %p226
      $region30: #{res_block_tdnn.1} parent=5 // pred_check_branch
        %229 = sbr.rel (%p227) target = $region32
      $region31: #{res_block_tdnn.1} parent=5 // pred_region
        // Predicated region
        $region33: #{res_block_tdnn.1} parent=31 // pred_check
          %p230 = pneg %p49
        $region34: #{res_block_tdnn.1} parent=31 // pred_check_branch
          %232 = sbr.rel (%p230) target = $region36
        $region35: #{res_block_tdnn.1} parent=31 // pred_region
          %s233 = smul.u32 4, %s23
          %s234 = ssub.s32 9, %s233
          %p235 = scmp.lt.s32.totalorder %s234, 4
          %s236 = scalar_select %p235, %s234, 4
          %s237 = smul.u32 64, %s236
          %p238 = scmp.lt.s32.totalorder %s22, 1
          %s239 = scalar_select %p238, %s22, 1
          %p240 = scmp.lt.s32.totalorder %s233, 8
          %s241 = scalar_select %p240, %s233, 8
          %s242 = smul.addr %s239, 9
          %s243 = sadd.s32 %s241, %s242
          %s244 = smul.addr %s243, 4
          %s245 = scalar_lea.vmem %s0, %s244
          %s246 = smul.u32 4, %s23
          %s247 = ssub.s32 9, %s246
          %p248 = scmp.lt.s32.totalorder %s247, 4
          %s249 = scalar_select %p248, %s247, 4
          %s250 = smul.u32 64, %s249
        $region36: #{res_block_tdnn.1} parent=31 // pred_fallthru
          _
        // Predicated region
        $region37: #{res_block_tdnn.1} parent=31 // pred_check
          %p251 = pneg %p81
        $region38: #{res_block_tdnn.1} parent=31 // pred_check_branch
          %253 = sbr.rel (%p251) target = $region40
        $region39: #{res_block_tdnn.1} parent=31 // pred_region
          %s254 = sadd.s32 %s23, 1
          %s255 = smul.u32 %s254, 4
          %p256 = scmp.lt.s32.totalorder %s22, 1
          %s257 = scalar_select %p256, %s22, 1
          %p258 = scmp.lt.s32.totalorder %s255, 8
          %s259 = scalar_select %p258, %s255, 8
          %s260 = smul.addr %s257, 9
          %s261 = sadd.s32 %s259, %s260
          %s262 = smul.addr %s261, 4
          %s263 = scalar_lea.vmem %s1, %s262
          %s264 = sadd.s32 %s23, 1
          %s265 = smul.u32 %s264, 4
        $region40: #{res_block_tdnn.1} parent=31 // pred_fallthru
          _
      $region32: #{res_block_tdnn.1} parent=5 // pred_fallthru
        _
      %p266 = scmp.le.s32.totalorder 1, %s15
      %p267 = scmp.lt.s32.totalorder %s15, 5
      %p268 = pnand %p266, %p267
      %p269 = pneg %p268
      // Predicated region
      $region41: #{res_block_tdnn.1} parent=5 // pred_check
        _
      $region42: #{res_block_tdnn.1} parent=5 // pred_check_branch
        %271 = sbr.rel (%p268) target = $region44
      $region43: #{res_block_tdnn.1} parent=5 // pred_region
        %s272 = ssub.s32 %s15, 1
        %s273 = smul.u32 4, %s25
        %s274 = ssub.s32 9, %s273
        %p275 = scmp.lt.s32.totalorder %s274, 4
        %s276 = scalar_select %p275, %s274, 4
        %s277 = smul.u32 64, %s276
        %p278 = scmp.lt.s32.totalorder %s24, 1
        %s279 = scalar_select %p278, %s24, 1
        %p280 = scmp.lt.s32.totalorder %s273, 8
        %s281 = scalar_select %p280, %s273, 8
        %s282 = smul.addr %s279, 9
        %s283 = sadd.s32 %s281, %s282
        %s284 = smul.addr %s283, 4
        %s285 = scalar_lea.vmem %s0, %s284
        %p286 = pneg %p55
        %p287 = pneg %p52
        %s288 = sadd.s32 %s25, 1
        %s289 = smul.u32 %s288, 4
        %p290 = scmp.lt.s32.totalorder %s24, 1
        %s291 = scalar_select %p290, %s24, 1
        %p292 = scmp.lt.s32.totalorder %s289, 8
        %s293 = scalar_select %p292, %s289, 8
        %s294 = smul.addr %s291, 9
        %s295 = sadd.s32 %s293, %s294
        %s296 = smul.addr %s295, 4
        %s297 = scalar_lea.vmem %s1, %s296
        %p298 = pneg %p87
        %p299 = pneg %p84
        %p300 = pneg %p108
        %p301 = pneg %p105
        %p302 = pneg %p129
        %p303 = pneg %p126
        %p304 = pneg %p150
        %p305 = pneg %p147
        %p306 = pneg %p171
        %p307 = pneg %p168
        %p308 = pneg %p199
        %p309 = pneg %p196
        %s310 = sand.u32 %s186, 1
        %s311 = scalar_lea.sflag [#allocation3], %s310
        %s312 = sand.u32 %s186, 1
        %s313 = smul.addr %s312, 32
        %s314 = scalar_lea.vmem [#allocation2], %s313
        %s315 = smul.u32 4, %s25
        %s316 = ssub.s32 9, %s315
        %p317 = scmp.lt.s32.totalorder %s316, 4
        %s318 = scalar_select %p317, %s316, 4
        %s319 = smul.u32 64, %s318
        %p320 = scmp.lt.s32.totalorder %s24, 1
        %s321 = scalar_select %p320, %s24, 1
        %p322 = scmp.lt.s32.totalorder %s315, 8
        %s323 = scalar_select %p322, %s315, 8
        %s324 = smul.addr %s321, 9
        %s325 = sadd.s32 %s323, %s324
        %s326 = smul.addr %s325, 4
        %s327 = scalar_lea.vmem %s0, %s326
        %s328 = smul.u32 4, %s25
        %s329 = ssub.s32 9, %s328
        %p330 = scmp.lt.s32.totalorder %s329, 4
        %s331 = scalar_select %p330, %s329, 4
        %s332 = smul.u32 64, %s331
        %s333 = sadd.s32 %s25, 1
        %s334 = smul.u32 %s333, 4
        %p335 = scmp.lt.s32.totalorder %s24, 1
        %s336 = scalar_select %p335, %s24, 1
        %p337 = scmp.lt.s32.totalorder %s334, 8
        %s338 = scalar_select %p337, %s334, 8
        %s339 = smul.addr %s336, 9
        %s340 = sadd.s32 %s338, %s339
        %s341 = smul.addr %s340, 4
        %s342 = scalar_lea.vmem %s1, %s341
        %s343 = sadd.s32 %s25, 1
        %s344 = smul.u32 %s343, 4
        %s345 = smul.u32 4, %s25
        %v347 = vld [vmem:[%s327] sm:$0xf]
        %v348 = vld [vmem:[%s327 + $0x4] sm:$0xf]
        %v349 = vld [vmem:[%s327 + $0x8] sm:$0xf]
        %v350 = vld [vmem:[%s327 + $0xc] sm:$0xf]
        %v351 = vld [vmem:[%s342] sm:$0x3]
        %v356 = vunpack.c.l.b16 %v347
        %v357 = vunpack.c.l.b16 %v348
        %v358 = vunpack.c.l.b16 %v349
        %v359 = vunpack.c.l.b16 %v350
        %v360 = vpack.c.b16 %v357, %v356
        %v361 = vpack.c.b16 %v359, %v358
        %v364 = vld [vmem:[%s2] sm:$0xf]
        %v365 = vld [vmem:[%s2 + $0x4] sm:$0xf]
        %v366 = vld [vmem:[%s2 + $0x8] sm:$0xf]
        %v367 = vld [vmem:[%s2 + $0xc] sm:$0xf]
        %v368 = vld [vmem:[%s2 + $0x10] sm:$0xf]
        %v369 = vld [vmem:[%s2 + $0x14] sm:$0xf]
        %v370 = vld [vmem:[%s2 + $0x18] sm:$0xf]
        %v371 = vld [vmem:[%s2 + $0x1c] sm:$0xf]
        %v372 = vld [vmem:[%s2 + $0x20] sm:$0xf]
        %v373 = vld [vmem:[%s2 + $0x24] sm:$0xf]
        %v374 = vld [vmem:[%s2 + $0x28] sm:$0xf]
        %v375 = vld [vmem:[%s2 + $0x2c] sm:$0xf]
        %v376 = vld [vmem:[%s2 + $0x30] sm:$0xf]
        %v377 = vld [vmem:[%s2 + $0x34] sm:$0xf]
        %v378 = vld [vmem:[%s2 + $0x38] sm:$0xf]
        %v379 = vld [vmem:[%s2 + $0x3c] sm:$0xf]
        %s380 = scalar_lea.vmem %s2, 64
        %v381 = vld [vmem:[%s380] sm:$0xf]
        %v382 = vld [vmem:[%s380 + $0x4] sm:$0xf]
        %v383 = vld [vmem:[%s380 + $0x8] sm:$0xf]
        %v384 = vld [vmem:[%s380 + $0xc] sm:$0xf]
        %v385 = vld [vmem:[%s380 + $0x10] sm:$0xf]
        %v386 = vld [vmem:[%s380 + $0x14] sm:$0xf]
        %v387 = vld [vmem:[%s380 + $0x18] sm:$0xf]
        %v388 = vld [vmem:[%s380 + $0x1c] sm:$0xf]
        %v389 = vld [vmem:[%s380 + $0x20] sm:$0xf]
        %v390 = vld [vmem:[%s380 + $0x24] sm:$0xf]
        %v391 = vld [vmem:[%s380 + $0x28] sm:$0xf]
        %v392 = vld [vmem:[%s380 + $0x2c] sm:$0xf]
        %v393 = vld [vmem:[%s380 + $0x30] sm:$0xf]
        %v394 = vld [vmem:[%s380 + $0x34] sm:$0xf]
        %v395 = vld [vmem:[%s380 + $0x38] sm:$0xf]
        %v396 = vld [vmem:[%s380 + $0x3c] sm:$0xf]
        %vm397 = vsmask.f32 7424
        %v399 = vshrl.u32 %v360, 16
        %v401 = vshll.u32 %v360, 16
        %v403 = vrot.slane %v401, 1
        %v404 = vor.u32 %v399, %v403
        %v406 = vshll.u32 %v361, 16
        %v408 = vrot.slane %v406, 1
        %v409 = vsel %vm397, %v404, %v408
        %v410 = vshrl.u32 %v361, 16
        %v412 = vor.u32 %v410, %v408
        %v414 = vshll.u32 %v351, 16
        %v416 = vrot.slane %v414, 1
        %v417 = vsel %vm397, %v412, %v416
        %v436 = vunpack.c.l.b16 %v381
        %v437 = vunpack.c.l.b16 %v382
        %v438 = vunpack.c.l.b16 %v383
        %v439 = vunpack.c.l.b16 %v384
        %v440 = vunpack.c.l.b16 %v385
        %v441 = vunpack.c.l.b16 %v386
        %v442 = vunpack.c.l.b16 %v387
        %v443 = vunpack.c.l.b16 %v388
        %v444 = vunpack.c.l.b16 %v389
        %v445 = vunpack.c.l.b16 %v390
        %v446 = vunpack.c.l.b16 %v391
        %v447 = vunpack.c.l.b16 %v392
        %v448 = vunpack.c.l.b16 %v393
        %v449 = vunpack.c.l.b16 %v394
        %v450 = vunpack.c.l.b16 %v395
        %v451 = vunpack.c.l.b16 %v396
        %v452 = vpack.c.b16 %v437, %v436
        %v453 = vpack.c.b16 %v439, %v438
        %v454 = vpack.c.b16 %v441, %v440
        %v455 = vpack.c.b16 %v443, %v442
        %v456 = vpack.c.b16 %v445, %v444
        %v457 = vpack.c.b16 %v447, %v446
        %v458 = vpack.c.b16 %v449, %v448
        %v459 = vpack.c.b16 %v451, %v450
        %468 = vmatprep.subr.bf16.mxu0 0
        %469 = vmatpush1.bf16.msra.mxu0 %v452
        %470 = vmatprep.subr.bf16.mxu0 0
        %471 = vmatpush1.bf16.msra.mxu0 %v453
        %472 = vmatprep.subr.bf16.mxu0 0
        %473 = vmatpush1.bf16.msra.mxu0 %v454
        %474 = vmatprep.subr.bf16.mxu0 0
        %475 = vmatpush1.bf16.msra.mxu0 %v455
        %476 = vmatprep.subr.bf16.mxu0 0
        %477 = vmatpush1.bf16.msra.mxu0 %v456
        %478 = vmatprep.subr.bf16.mxu0 0
        %479 = vmatpush1.bf16.msra.mxu0 %v457
        %480 = vmatprep.subr.bf16.mxu0 0
        %481 = vmatpush1.bf16.msra.mxu0 %v458
        %482 = vmatprep.subr.bf16.mxu0 0
        %483 = vmatpush1.bf16.msra.mxu0 %v459
        %484 = vmatprep.subr.bf16.mxu0 0
        %485 = vmatpush1.bf16.msra.mxu0 0
        %486 = vmatprep.subr.bf16.mxu0 0
        %487 = vmatpush1.bf16.msra.mxu0 0
        %488 = vmatprep.subr.bf16.mxu0 0
        %489 = vmatpush1.bf16.msra.mxu0 0
        %490 = vmatprep.subr.bf16.mxu0 0
        %491 = vmatpush1.bf16.msra.mxu0 0
        %492 = vmatprep.subr.bf16.mxu0 0
        %493 = vmatpush1.bf16.msra.mxu0 0
        %494 = vmatprep.subr.bf16.mxu0 0
        %495 = vmatpush1.bf16.msra.mxu0 0
        %496 = vmatprep.subr.bf16.mxu0 0
        %497 = vmatpush1.bf16.msra.mxu0 0
        %498 = vmatprep.subr.bf16.mxu0 0
        %499 = vmatpush1.bf16.msra.mxu0 0
        %500 = vmatprep.mubr.bf16.mxu0 0
        %501 = vmatmul.mubr.bf16.gmra.mrb[0].mxu0 %v409
        %v502 = vpop.f32.mrb[0].mxu0
        %v503 = vadd.f32 0.0, %v502
        %v504 = vpop.f32.mrb[0].mxu0
        %v505 = vpop.f32.mrb[0].mxu0
        %v506 = vadd.f32 0.0, %v505
        %v507 = vpop.f32.mrb[0].mxu0
        %508 = vmatprep.mubr.bf16.mxu0 0
        %509 = vmatmul.mubr.bf16.gmra.mrb[0].mxu0 %v417
        %v510 = vpop.f32.mrb[0].mxu0
        %v511 = vadd.f32 0.0, %v510
        %v512 = vpop.f32.mrb[0].mxu0
        %v513 = vpop.f32.mrb[0].mxu0
        %v514 = vadd.f32 0.0, %v513
        %v515 = vpop.f32.mrb[0].mxu0
        %516 = vdwg.mxu0
        %v533 = vunpack.c.l.b16 %v364
        %v534 = vunpack.c.l.b16 %v365
        %v535 = vunpack.c.l.b16 %v366
        %v536 = vunpack.c.l.b16 %v367
        %v537 = vunpack.c.l.b16 %v368
        %v538 = vunpack.c.l.b16 %v369
        %v539 = vunpack.c.l.b16 %v370
        %v540 = vunpack.c.l.b16 %v371
        %v541 = vunpack.c.l.b16 %v372
        %v542 = vunpack.c.l.b16 %v373
        %v543 = vunpack.c.l.b16 %v374
        %v544 = vunpack.c.l.b16 %v375
        %v545 = vunpack.c.l.b16 %v376
        %v546 = vunpack.c.l.b16 %v377
        %v547 = vunpack.c.l.b16 %v378
        %v548 = vunpack.c.l.b16 %v379
        %v549 = vpack.c.b16 %v534, %v533
        %v550 = vpack.c.b16 %v536, %v535
        %v551 = vpack.c.b16 %v538, %v537
        %v552 = vpack.c.b16 %v540, %v539
        %v553 = vpack.c.b16 %v542, %v541
        %v554 = vpack.c.b16 %v544, %v543
        %v555 = vpack.c.b16 %v546, %v545
        %v556 = vpack.c.b16 %v548, %v547
        %565 = vmatprep.subr.bf16.mxu0 0
        %566 = vmatpush1.bf16.msra.mxu0 %v549
        %567 = vmatprep.subr.bf16.mxu0 0
        %568 = vmatpush1.bf16.msra.mxu0 %v550
        %569 = vmatprep.subr.bf16.mxu0 0
        %570 = vmatpush1.bf16.msra.mxu0 %v551
        %571 = vmatprep.subr.bf16.mxu0 0
        %572 = vmatpush1.bf16.msra.mxu0 %v552
        %573 = vmatprep.subr.bf16.mxu0 0
        %574 = vmatpush1.bf16.msra.mxu0 %v553
        %575 = vmatprep.subr.bf16.mxu0 0
        %576 = vmatpush1.bf16.msra.mxu0 %v554
        %577 = vmatprep.subr.bf16.mxu0 0
        %578 = vmatpush1.bf16.msra.mxu0 %v555
        %579 = vmatprep.subr.bf16.mxu0 0
        %580 = vmatpush1.bf16.msra.mxu0 %v556
        %581 = vmatprep.subr.bf16.mxu0 0
        %582 = vmatpush1.bf16.msra.mxu0 0
        %583 = vmatprep.subr.bf16.mxu0 0
        %584 = vmatpush1.bf16.msra.mxu0 0
        %585 = vmatprep.subr.bf16.mxu0 0
        %586 = vmatpush1.bf16.msra.mxu0 0
        %587 = vmatprep.subr.bf16.mxu0 0
        %588 = vmatpush1.bf16.msra.mxu0 0
        %589 = vmatprep.subr.bf16.mxu0 0
        %590 = vmatpush1.bf16.msra.mxu0 0
        %591 = vmatprep.subr.bf16.mxu0 0
        %592 = vmatpush1.bf16.msra.mxu0 0
        %593 = vmatprep.subr.bf16.mxu0 0
        %594 = vmatpush1.bf16.msra.mxu0 0
        %595 = vmatprep.subr.bf16.mxu0 0
        %596 = vmatpush1.bf16.msra.mxu0 0
        %597 = vmatprep.mubr.bf16.mxu0 0
        %598 = vmatmul.mubr.bf16.gmra.mrb[0].mxu0 %v360
        %v599 = vpop.f32.mrb[0].mxu0
        %v600 = vadd.f32 %v503, %v599
        %v601 = vpop.f32.mrb[0].mxu0
        %v602 = vpop.f32.mrb[0].mxu0
        %v603 = vadd.f32 %v506, %v602
        %v604 = vpop.f32.mrb[0].mxu0
        %605 = vmatprep.mubr.bf16.mxu0 0
        %606 = vmatmul.mubr.bf16.gmra.mrb[0].mxu0 %v361
        %v607 = vpop.f32.mrb[0].mxu0
        %v608 = vadd.f32 %v511, %v607
        %v609 = vpop.f32.mrb[0].mxu0
        %v610 = vpop.f32.mrb[0].mxu0
        %v611 = vadd.f32 %v514, %v610
        %v612 = vpop.f32.mrb[0].mxu0
        %613 = vdwg.mxu0
        %s614 = scalar_lea.vmem %s2, 128
        %v615 = vld [vmem:[%s614] sm:$0xf]
        %v616 = vld [vmem:[%s614 + $0x4] sm:$0xf]
        %v617 = vld [vmem:[%s614 + $0x8] sm:$0xf]
        %v618 = vld [vmem:[%s614 + $0xc] sm:$0xf]
        %v619 = vld [vmem:[%s614 + $0x10] sm:$0xf]
        %v620 = vld [vmem:[%s614 + $0x14] sm:$0xf]
        %v621 = vld [vmem:[%s614 + $0x18] sm:$0xf]
        %v622 = vld [vmem:[%s614 + $0x1c] sm:$0xf]
        %v623 = vld [vmem:[%s614 + $0x20] sm:$0xf]
        %v624 = vld [vmem:[%s614 + $0x24] sm:$0xf]
        %v625 = vld [vmem:[%s614 + $0x28] sm:$0xf]
        %v626 = vld [vmem:[%s614 + $0x2c] sm:$0xf]
        %v627 = vld [vmem:[%s614 + $0x30] sm:$0xf]
        %v628 = vld [vmem:[%s614 + $0x34] sm:$0xf]
        %v629 = vld [vmem:[%s614 + $0x38] sm:$0xf]
        %v630 = vld [vmem:[%s614 + $0x3c] sm:$0xf]
        %vm632 = vcmask 1046528
        %v633 = vrot.slane %v360, 1
        %v634 = vrot.slane %v361, 1
        %v635 = vsel %vm632, %v633, %v634
        %v636 = vrot.slane %v351, 1
        %v637 = vsel %vm632, %v634, %v636
        %v656 = vunpack.c.l.b16 %v615
        %v657 = vunpack.c.l.b16 %v616
        %v658 = vunpack.c.l.b16 %v617
        %v659 = vunpack.c.l.b16 %v618
        %v660 = vunpack.c.l.b16 %v619
        %v661 = vunpack.c.l.b16 %v620
        %v662 = vunpack.c.l.b16 %v621
        %v663 = vunpack.c.l.b16 %v622
        %v664 = vunpack.c.l.b16 %v623
        %v665 = vunpack.c.l.b16 %v624
        %v666 = vunpack.c.l.b16 %v625
        %v667 = vunpack.c.l.b16 %v626
        %v668 = vunpack.c.l.b16 %v627
        %v669 = vunpack.c.l.b16 %v628
        %v670 = vunpack.c.l.b16 %v629
        %v671 = vunpack.c.l.b16 %v630
        %v672 = vpack.c.b16 %v657, %v656
        %v673 = vpack.c.b16 %v659, %v658
        %v674 = vpack.c.b16 %v661, %v660
        %v675 = vpack.c.b16 %v663, %v662
        %v676 = vpack.c.b16 %v665, %v664
        %v677 = vpack.c.b16 %v667, %v666
        %v678 = vpack.c.b16 %v669, %v668
        %v679 = vpack.c.b16 %v671, %v670
        %688 = vmatprep.subr.bf16.mxu0 0
        %689 = vmatpush1.bf16.msra.mxu0 %v672
        %690 = vmatprep.subr.bf16.mxu0 0
        %691 = vmatpush1.bf16.msra.mxu0 %v673
        %692 = vmatprep.subr.bf16.mxu0 0
        %693 = vmatpush1.bf16.msra.mxu0 %v674
        %694 = vmatprep.subr.bf16.mxu0 0
        %695 = vmatpush1.bf16.msra.mxu0 %v675
        %696 = vmatprep.subr.bf16.mxu0 0
        %697 = vmatpush1.bf16.msra.mxu0 %v676
        %698 = vmatprep.subr.bf16.mxu0 0
        %699 = vmatpush1.bf16.msra.mxu0 %v677
        %700 = vmatprep.subr.bf16.mxu0 0
        %701 = vmatpush1.bf16.msra.mxu0 %v678
        %702 = vmatprep.subr.bf16.mxu0 0
        %703 = vmatpush1.bf16.msra.mxu0 %v679
        %704 = vmatprep.subr.bf16.mxu0 0
        %705 = vmatpush1.bf16.msra.mxu0 0
        %706 = vmatprep.subr.bf16.mxu0 0
        %707 = vmatpush1.bf16.msra.mxu0 0
        %708 = vmatprep.subr.bf16.mxu0 0
        %709 = vmatpush1.bf16.msra.mxu0 0
        %710 = vmatprep.subr.bf16.mxu0 0
        %711 = vmatpush1.bf16.msra.mxu0 0
        %712 = vmatprep.subr.bf16.mxu0 0
        %713 = vmatpush1.bf16.msra.mxu0 0
        %714 = vmatprep.subr.bf16.mxu0 0
        %715 = vmatpush1.bf16.msra.mxu0 0
        %716 = vmatprep.subr.bf16.mxu0 0
        %717 = vmatpush1.bf16.msra.mxu0 0
        %718 = vmatprep.subr.bf16.mxu0 0
        %719 = vmatpush1.bf16.msra.mxu0 0
        %720 = vmatprep.mubr.bf16.mxu0 0
        %721 = vmatmul.mubr.bf16.gmra.mrb[0].mxu0 %v635
        %v722 = vpop.f32.mrb[0].mxu0
        %v723 = vadd.f32 0.0, %v722
        %v724 = vpop.f32.mrb[0].mxu0
        %v725 = vpop.f32.mrb[0].mxu0
        %v726 = vadd.f32 0.0, %v725
        %v727 = vpop.f32.mrb[0].mxu0
        %728 = vmatprep.mubr.bf16.mxu0 0
        %729 = vmatmul.mubr.bf16.gmra.mrb[0].mxu0 %v637
        %v730 = vpop.f32.mrb[0].mxu0
        %v731 = vadd.f32 0.0, %v730
        %v732 = vpop.f32.mrb[0].mxu0
        %v733 = vpop.f32.mrb[0].mxu0
        %v734 = vadd.f32 0.0, %v733
        %v735 = vpop.f32.mrb[0].mxu0
        %736 = vdwg.mxu0
        %v737 = vadd.f32 %v600, %v723
        %v738 = vadd.f32 %v603, %v726
        %v739 = vadd.f32 %v608, %v731
        %v740 = vadd.f32 %v611, %v734
        %s741 = scalar_lea.vmem %s2, 192
        %v742 = vld [vmem:[%s741] sm:$0xf]
        %v743 = vld [vmem:[%s741 + $0x4] sm:$0xf]
        %v744 = vld [vmem:[%s741 + $0x8] sm:$0xf]
        %v745 = vld [vmem:[%s741 + $0xc] sm:$0xf]
        %v746 = vld [vmem:[%s741 + $0x10] sm:$0xf]
        %v747 = vld [vmem:[%s741 + $0x14] sm:$0xf]
        %v748 = vld [vmem:[%s741 + $0x18] sm:$0xf]
        %v749 = vld [vmem:[%s741 + $0x1c] sm:$0xf]
        %v750 = vld [vmem:[%s741 + $0x20] sm:$0xf]
        %v751 = vld [vmem:[%s741 + $0x24] sm:$0xf]
        %v752 = vld [vmem:[%s741 + $0x28] sm:$0xf]
        %v753 = vld [vmem:[%s741 + $0x2c] sm:$0xf]
        %v754 = vld [vmem:[%s741 + $0x30] sm:$0xf]
        %v755 = vld [vmem:[%s741 + $0x34] sm:$0xf]
        %v756 = vld [vmem:[%s741 + $0x38] sm:$0xf]
        %v757 = vld [vmem:[%s741 + $0x3c] sm:$0xf]
        %vm758 = vsmask.f32 6400
        %v759 = vrot.slane %v399, 1
        %v760 = vrot.slane %v401, 2
        %v761 = vor.u32 %v759, %v760
        %v762 = vrot.slane %v410, 1
        %v763 = vrot.slane %v406, 2
        %v764 = vor.u32 %v762, %v763
        %v765 = vsel %vm758, %v761, %v764
        %v766 = vshrl.u32 %v351, 16
        %v768 = vrot.slane %v766, 1
        %v769 = vrot.slane %v414, 2
        %v770 = vor.u32 %v768, %v769
        %v771 = vsel %vm758, %v764, %v770
        %v790 = vunpack.c.l.b16 %v742
        %v791 = vunpack.c.l.b16 %v743
        %v792 = vunpack.c.l.b16 %v744
        %v793 = vunpack.c.l.b16 %v745
        %v794 = vunpack.c.l.b16 %v746
        %v795 = vunpack.c.l.b16 %v747
        %v796 = vunpack.c.l.b16 %v748
        %v797 = vunpack.c.l.b16 %v749
        %v798 = vunpack.c.l.b16 %v750
        %v799 = vunpack.c.l.b16 %v751
        %v800 = vunpack.c.l.b16 %v752
        %v801 = vunpack.c.l.b16 %v753
        %v802 = vunpack.c.l.b16 %v754
        %v803 = vunpack.c.l.b16 %v755
        %v804 = vunpack.c.l.b16 %v756
        %v805 = vunpack.c.l.b16 %v757
        %v806 = vpack.c.b16 %v791, %v790
        %v807 = vpack.c.b16 %v793, %v792
        %v808 = vpack.c.b16 %v795, %v794
        %v809 = vpack.c.b16 %v797, %v796
        %v810 = vpack.c.b16 %v799, %v798
        %v811 = vpack.c.b16 %v801, %v800
        %v812 = vpack.c.b16 %v803, %v802
        %v813 = vpack.c.b16 %v805, %v804
        %822 = vmatprep.subr.bf16.mxu0 0
        %823 = vmatpush1.bf16.msra.mxu0 %v806
        %824 = vmatprep.subr.bf16.mxu0 0
        %825 = vmatpush1.bf16.msra.mxu0 %v807
        %826 = vmatprep.subr.bf16.mxu0 0
        %827 = vmatpush1.bf16.msra.mxu0 %v808
        %828 = vmatprep.subr.bf16.mxu0 0
        %829 = vmatpush1.bf16.msra.mxu0 %v809
        %830 = vmatprep.subr.bf16.mxu0 0
        %831 = vmatpush1.bf16.msra.mxu0 %v810
        %832 = vmatprep.subr.bf16.mxu0 0
        %833 = vmatpush1.bf16.msra.mxu0 %v811
        %834 = vmatprep.subr.bf16.mxu0 0
        %835 = vmatpush1.bf16.msra.mxu0 %v812
        %836 = vmatprep.subr.bf16.mxu0 0
        %837 = vmatpush1.bf16.msra.mxu0 %v813
        %838 = vmatprep.subr.bf16.mxu0 0
        %839 = vmatpush1.bf16.msra.mxu0 0
        %840 = vmatprep.subr.bf16.mxu0 0
        %841 = vmatpush1.bf16.msra.mxu0 0
        %842 = vmatprep.subr.bf16.mxu0 0
        %843 = vmatpush1.bf16.msra.mxu0 0
        %844 = vmatprep.subr.bf16.mxu0 0
        %845 = vmatpush1.bf16.msra.mxu0 0
        %846 = vmatprep.subr.bf16.mxu0 0
        %847 = vmatpush1.bf16.msra.mxu0 0
        %848 = vmatprep.subr.bf16.mxu0 0
        %849 = vmatpush1.bf16.msra.mxu0 0
        %850 = vmatprep.subr.bf16.mxu0 0
        %851 = vmatpush1.bf16.msra.mxu0 0
        %852 = vmatprep.subr.bf16.mxu0 0
        %853 = vmatpush1.bf16.msra.mxu0 0
        %854 = vmatprep.mubr.bf16.mxu0 0
        %855 = vmatmul.mubr.bf16.gmra.mrb[0].mxu0 %v765
        %v856 = vpop.f32.mrb[0].mxu0
        %v857 = vadd.f32 0.0, %v856
        %v858 = vpop.f32.mrb[0].mxu0
        %v859 = vpop.f32.mrb[0].mxu0
        %v860 = vadd.f32 0.0, %v859
        %v861 = vpop.f32.mrb[0].mxu0
        %862 = vmatprep.mubr.bf16.mxu0 0
        %863 = vmatmul.mubr.bf16.gmra.mrb[0].mxu0 %v771
        %v864 = vpop.f32.mrb[0].mxu0
        %v865 = vadd.f32 0.0, %v864
        %v866 = vpop.f32.mrb[0].mxu0
        %v867 = vpop.f32.mrb[0].mxu0
        %v868 = vadd.f32 0.0, %v867
        %v869 = vpop.f32.mrb[0].mxu0
        %870 = vdwg.mxu0
        %v871 = vadd.f32 %v737, %v857
        %v872 = vadd.f32 %v738, %v860
        %v873 = vadd.f32 %v739, %v865
        %v874 = vadd.f32 %v740, %v868
        %s875 = scalar_lea.vmem %s2, 256
        %v876 = vld [vmem:[%s875] sm:$0xf]
        %v877 = vld [vmem:[%s875 + $0x4] sm:$0xf]
        %v878 = vld [vmem:[%s875 + $0x8] sm:$0xf]
        %v879 = vld [vmem:[%s875 + $0xc] sm:$0xf]
        %v880 = vld [vmem:[%s875 + $0x10] sm:$0xf]
        %v881 = vld [vmem:[%s875 + $0x14] sm:$0xf]
        %v882 = vld [vmem:[%s875 + $0x18] sm:$0xf]
        %v883 = vld [vmem:[%s875 + $0x1c] sm:$0xf]
        %v884 = vld [vmem:[%s875 + $0x20] sm:$0xf]
        %v885 = vld [vmem:[%s875 + $0x24] sm:$0xf]
        %v886 = vld [vmem:[%s875 + $0x28] sm:$0xf]
        %v887 = vld [vmem:[%s875 + $0x2c] sm:$0xf]
        %v888 = vld [vmem:[%s875 + $0x30] sm:$0xf]
        %v889 = vld [vmem:[%s875 + $0x34] sm:$0xf]
        %v890 = vld [vmem:[%s875 + $0x38] sm:$0xf]
        %v891 = vld [vmem:[%s875 + $0x3c] sm:$0xf]
        %vm892 = vcmask 1045504
        %v893 = vrot.slane %v360, 2
        %v894 = vrot.slane %v361, 2
        %v895 = vsel %vm892, %v893, %v894
        %v896 = vrot.slane %v351, 2
        %v897 = vsel %vm892, %v894, %v896
        %v916 = vunpack.c.l.b16 %v876
        %v917 = vunpack.c.l.b16 %v877
        %v918 = vunpack.c.l.b16 %v878
        %v919 = vunpack.c.l.b16 %v879
        %v920 = vunpack.c.l.b16 %v880
        %v921 = vunpack.c.l.b16 %v881
        %v922 = vunpack.c.l.b16 %v882
        %v923 = vunpack.c.l.b16 %v883
        %v924 = vunpack.c.l.b16 %v884
        %v925 = vunpack.c.l.b16 %v885
        %v926 = vunpack.c.l.b16 %v886
        %v927 = vunpack.c.l.b16 %v887
        %v928 = vunpack.c.l.b16 %v888
        %v929 = vunpack.c.l.b16 %v889
        %v930 = vunpack.c.l.b16 %v890
        %v931 = vunpack.c.l.b16 %v891
        %v932 = vpack.c.b16 %v917, %v916
        %v933 = vpack.c.b16 %v919, %v918
        %v934 = vpack.c.b16 %v921, %v920
        %v935 = vpack.c.b16 %v923, %v922
        %v936 = vpack.c.b16 %v925, %v924
        %v937 = vpack.c.b16 %v927, %v926
        %v938 = vpack.c.b16 %v929, %v928
        %v939 = vpack.c.b16 %v931, %v930
        %948 = vmatprep.subr.bf16.mxu0 0
        %949 = vmatpush1.bf16.msra.mxu0 %v932
        %950 = vmatprep.subr.bf16.mxu0 0
        %951 = vmatpush1.bf16.msra.mxu0 %v933
        %952 = vmatprep.subr.bf16.mxu0 0
        %953 = vmatpush1.bf16.msra.mxu0 %v934
        %954 = vmatprep.subr.bf16.mxu0 0
        %955 = vmatpush1.bf16.msra.mxu0 %v935
        %956 = vmatprep.subr.bf16.mxu0 0
        %957 = vmatpush1.bf16.msra.mxu0 %v936
        %958 = vmatprep.subr.bf16.mxu0 0
        %959 = vmatpush1.bf16.msra.mxu0 %v937
        %960 = vmatprep.subr.bf16.mxu0 0
        %961 = vmatpush1.bf16.msra.mxu0 %v938
        %962 = vmatprep.subr.bf16.mxu0 0
        %963 = vmatpush1.bf16.msra.mxu0 %v939
        %964 = vmatprep.subr.bf16.mxu0 0
        %965 = vmatpush1.bf16.msra.mxu0 0
        %966 = vmatprep.subr.bf16.mxu0 0
        %967 = vmatpush1.bf16.msra.mxu0 0
        %968 = vmatprep.subr.bf16.mxu0 0
        %969 = vmatpush1.bf16.msra.mxu0 0
        %970 = vmatprep.subr.bf16.mxu0 0
        %971 = vmatpush1.bf16.msra.mxu0 0
        %972 = vmatprep.subr.bf16.mxu0 0
        %973 = vmatpush1.bf16.msra.mxu0 0
        %974 = vmatprep.subr.bf16.mxu0 0
        %975 = vmatpush1.bf16.msra.mxu0 0
        %976 = vmatprep.subr.bf16.mxu0 0
        %977 = vmatpush1.bf16.msra.mxu0 0
        %978 = vmatprep.subr.bf16.mxu0 0
        %979 = vmatpush1.bf16.msra.mxu0 0
        %980 = vmatprep.mubr.bf16.mxu0 0
        %981 = vmatmul.mubr.bf16.gmra.mrb[0].mxu0 %v895
        %v982 = vpop.f32.mrb[0].mxu0
        %v983 = vadd.f32 0.0, %v982
        %v984 = vpop.f32.mrb[0].mxu0
        %v985 = vpop.f32.mrb[0].mxu0
        %v986 = vadd.f32 0.0, %v985
        %v987 = vpop.f32.mrb[0].mxu0
        %988 = vmatprep.mubr.bf16.mxu0 0
        %989 = vmatmul.mubr.bf16.gmra.mrb[0].mxu0 %v897
        %v990 = vpop.f32.mrb[0].mxu0
        %v991 = vadd.f32 0.0, %v990
        %v992 = vpop.f32.mrb[0].mxu0
        %v993 = vpop.f32.mrb[0].mxu0
        %v994 = vadd.f32 0.0, %v993
        %v995 = vpop.f32.mrb[0].mxu0
        %996 = vdwg.mxu0
        %v997 = vadd.f32 %v871, %v983
        %v998 = vadd.f32 %v872, %v986
        %v999 = vadd.f32 %v873, %v991
        %v1000 = vadd.f32 %v874, %v994
        %v1001 = vld [vmem:[%s3] sm:$0x1]
        %v1003 = vlaneseq
        %v1004 = vshrl.u32 %v1003, 7
        %v1005 = vsub.s32 0, %v1004
        %v1006 = vrot.slane %v1001, %v1005
        %v1008 = vadd.f32 %v997, %v1006
        %v1009 = vadd.f32 %v998, %v1006
        %v1010 = vadd.f32 %v999, %v1006
        %v1011 = vadd.f32 %v1000, %v1006
        %v1012 = vmax.f32 %v1008, 0.0
        %v1013 = vmax.f32 %v1009, 0.0
        %v1014 = vmax.f32 %v1010, 0.0
        %v1015 = vmax.f32 %v1011, 0.0
        %v1016 = vld [vmem:[%s4] sm:$0x1]
        %v1018 = vlaneseq
        %v1019 = vshrl.u32 %v1018, 7
        %v1020 = vsub.s32 0, %v1019
        %v1021 = vrot.slane %v1016, %v1020
        %v1023 = vmul.f32 %v1012, %v1021
        %v1024 = vmul.f32 %v1013, %v1021
        %v1025 = vmul.f32 %v1014, %v1021
        %v1026 = vmul.f32 %v1015, %v1021
        %v1027 = vld [vmem:[%s5] sm:$0x1]
        %v1029 = vlaneseq
        %v1030 = vshrl.u32 %v1029, 7
        %v1031 = vsub.s32 0, %v1030
        %v1032 = vrot.slane %v1027, %v1031
        %v1034 = vadd.f32 %v1023, %v1032
        %v1035 = vadd.f32 %v1024, %v1032
        %v1036 = vadd.f32 %v1025, %v1032
        %v1037 = vadd.f32 %v1026, %v1032
        %v1038 = vunpack.c.l.bf16 %v360
        %v1039 = vunpack.c.h.bf16 %v360
        %v1040 = vunpack.c.l.bf16 %v361
        %v1041 = vunpack.c.h.bf16 %v361
        %v1042 = vunpack.c.l.bf16 %v351
        %vm1048 = vcmask 1045504
        %v1049 = vrot.slane %v1038, 2
        %v1050 = vrot.slane %v1039, 2
        %v1051 = vsel %vm1048, %v1049, %v1050
        %v1052 = vrot.slane %v1040, 2
        %v1053 = vsel %vm1048, %v1050, %v1052
        %v1054 = vrot.slane %v1041, 2
        %v1055 = vsel %vm1048, %v1052, %v1054
        %v1056 = vrot.slane %v1042, 2
        %v1057 = vsel %vm1048, %v1054, %v1056
        %v1062 = vadd.f32 %v1034, %v1051
        %v1063 = vadd.f32 %v1035, %v1053
        %v1064 = vadd.f32 %v1036, %v1055
        %v1065 = vadd.f32 %v1037, %v1057
        %1066 = vst [vmem:[%s314] sm:$0xff] %v1062
        %1067 = vst [vmem:[%s314 + $0x8] sm:$0xff] %v1063
        %1068 = vst [vmem:[%s314 + $0x10] sm:$0xff] %v1064
        %1069 = vst [vmem:[%s314 + $0x18] sm:$0xff] %v1065
        %s1070 = sand.u32 %s186, 1
        %s1071 = scalar_lea.sflag [#allocation3], %s1070
        %s1072 = sand.u32 %s186, 1
        %s1073 = smul.addr %s1072, 32
        %s1074 = scalar_lea.vmem [#allocation2], %s1073
        // Predicated region
        $region45: #{res_block_tdnn.1} parent=43 // pred_check
          %p1075 = pneg %p196
        $region46: #{res_block_tdnn.1} parent=43 // pred_check_branch
          %1077 = sbr.rel (%p1075) target = $region48
        $region47: #{res_block_tdnn.1} parent=43 // pred_region
          %s1078 = smul.u32 4, %s25
          %s1080 = ssub.s32 512, 512
          %1081 = vsyncadd %s1071, %s1080
          %s1082 = smul.addr %s24, 8
          %s1083 = sadd.s32 %s1078, %s1082
          %s1084 = smul.addr %s1083, 128
          %s1085 = scalar_lea.hbm %s6, %s1084
          %s1086 = sshll.u32 %s1074, 4
          %s1087 = int_to_ptr.vmem [resolvable:$true] %s1086
          %1092 = dma.vmem_to_hbm [thread:$0]  %s1087, 512, %s1085, %s1071, 128, 128, 8
        $region48: #{res_block_tdnn.1} parent=43 // pred_fallthru
          _
      $region44: #{res_block_tdnn.1} parent=5 // pred_fallthru
        _
      %p1093 = scmp.le.s32.totalorder 2, %s15
      // Predicated region
      $region49: #{res_block_tdnn.1} parent=5 // pred_check
        %p1094 = pneg %p1093
      $region50: #{res_block_tdnn.1} parent=5 // pred_check_branch
        %1096 = sbr.rel (%p1094) target = $region52
      $region51: #{res_block_tdnn.1} parent=5 // pred_region
        %s1097 = ssub.s32 %s15, 2
        // Predicated region
        $region53: #{res_block_tdnn.1} parent=51 // pred_check
          %p1098 = pneg %p202
        $region54: #{res_block_tdnn.1} parent=51 // pred_check_branch
          %1100 = sbr.rel (%p1098) target = $region56
        $region55: #{res_block_tdnn.1} parent=51 // pred_region
          %s1101 = sand.u32 %s187, 1
          %s1102 = scalar_lea.sflag [#allocation3], %s1101
          %s1103 = sand.u32 %s187, 1
          %s1104 = smul.addr %s1103, 32
          %s1105 = scalar_lea.vmem [#allocation2], %s1104
          %1106 = dma.done %s1102, 512
        $region56: #{res_block_tdnn.1} parent=51 // pred_fallthru
          _
      $region52: #{res_block_tdnn.1} parent=5 // pred_fallthru
        _
    $region6: #{res_block_tdnn.1} parent=1 // loop_footer
      %s19 = sadd.s32 1, %s15
    $region7: #{res_block_tdnn.1} parent=1 // loop_footer_branch
      %14 = sbr.rel target = $region3
    $region8: #{res_block_tdnn.1} parent=1 // loop_exit
      _
    %1107 = vsyncpa [#allocation3], 1
    %s1108 = scalar_lea.sflag [#allocation3], 1
    %1109 = vsyncpa %s1108, 1

</llo_original>
